<compile_context>
chip_gen: v5e
topology: v5e:2x2
jax: 0.10.0
libtpu: 0.0.40
codegen_flags: <defaults>
</compile_context>

<pallas_src>
import jax
import jax.numpy as jnp
import numpy as np
from jax.experimental import pallas as pl
from jax.experimental.pallas import tpu as pltpu

_VMEM_LIMIT_BYTES = 48 << 20     # < 64 MiB physical (v7x), well under v5e/v6e's 128 MiB
_MAIN_STREAM_BUDGET = 20 << 20   # double-buffered feats+out+prev working-set target
_TRANS_BUDGET = 12 << 20         # double-buffered tiled-transition block cap


def _crf_forward_kernel(prev_ref, feats_ref, trans_ref, out_ref):
    # prev_ref : (BB, BL) int8/int32 -- gold previous-tag id, repeated T times
    #                                   along the flattened (seq, tag) lane axis
    # feats_ref: (BB, BL) f32/bf16   -- RNN features, flattened over (seq, tag)
    # trans_ref: (T+1, BL)           -- trans tiled along the flattened lane
    #                                   axis; resident across the inner grid axis
    # out_ref  : (BB, BL) same dtype as feats
    tt = trans_ref[...]                                # (T+1, BL)
    num_rows = tt.shape[0]                             # tag_size + 1 (static)
    prev = prev_ref[...].astype(jnp.int32)             # compare in i32 (cheap, safe)
    feats = feats_ref[...].astype(tt.dtype)

    # gathered[b, l] = trans_tiled[prev[b, l], l], built from tag_size unrolled
    # VPU selects (row 0 is the init, so k starts at 1).  No MXU round-trip;
    # CRF tag sets are small.
    # TODO(synk): for tag_size >= ~128 a one-hot MXU gather would be better.
    gathered = jnp.broadcast_to(tt[0:1, :], feats.shape)
    for k in range(1, num_rows):
        gathered = jnp.where(prev == k, tt[k:k + 1, :], gathered)

    out_ref[...] = (feats + gathered).astype(out_ref.dtype)


def _pick_lane_block(L, cap):
    """Lane (last-dim) block: full L if it fits, else a multiple of 128
    (exact divisor preferred, ragged last block otherwise)."""
    if L <= cap:
        return L
    cap = max(128, (cap // 128) * 128)
    b = cap
    while b >= 128:
        if L % b == 0:
            return b
        b -= 128
    return cap  # ragged last block; Pallas masks it


def _pick_row_block(B, cap, align):
    """Row (second-minor) block: full B if it fits, else a multiple of `align`
    (exact divisor preferred, ragged last block otherwise)."""
    if B <= cap:
        return B
    cap = max(align, (cap // align) * align)
    b = cap
    while b >= align:
        if B % b == 0:
            return b
        b -= align
    return cap  # ragged last block


@jax.jit
def crf_forward(feats, tags, trans):
    """Pallas implementation of CRFs.forward: feats + trans[shifted gold tags]."""
    B, S, T = feats.shape
    tag_size = trans.shape[1]
    assert trans.shape == (tag_size + 1, tag_size)
    assert T == tag_size, "feature dim must equal tag_size (feats + t requires it)"

    # "previous tag" per position: [start, tag_0, ..., tag_{S-2}] per batch row.
    # The start position uses the last row of `trans` (index tag_size).
    start = jnp.full((B, 1), tag_size, dtype=jnp.int32)
    prev = jnp.concatenate([start, tags.astype(jnp.int32)[:, :-1]], axis=1)  # (B, S)
    # NOTE: tag values outside [0, tag_size] silently gather trans[0] here (a
    # real gather would fault); clamp/validate upstream if that matters.

    # Compute dtype: keep bf16 end-to-end (halves VPU work / vregs on v6e/v7x),
    # otherwise f32.  Tag ids fit in int8 for realistic tag sets -> 4x smaller
    # prev HBM stream.
    compute_dtype = jnp.bfloat16 if feats.dtype == jnp.bfloat16 else jnp.float32
    idx_dtype = jnp.int8 if tag_size + 1 <= 127 else jnp.int32

    # Flatten (seq, tag) into one lane-dense axis of length L = S*T (free,
    # contiguous reshape) so stores are unmasked and DMA rows are dense.
    L = S * T
    feats2 = feats.reshape(B, L)
    prev_exp = jnp.repeat(prev.astype(idx_dtype), T, axis=1)           # (B, L)
    trans_tiled = jnp.tile(trans.astype(compute_dtype), (1, S))        # (T+1, L)

    # ---- block sizing -----------------------------------------------------
    c_itemsize = np.dtype(compute_dtype).itemsize
    f_itemsize = np.dtype(feats.dtype).itemsize
    i_itemsize = np.dtype(idx_dtype).itemsize

    # Keep the double-buffered tiled-transition block bounded (only matters
    # for very large tag sets).
    max_bl_for_trans = _TRANS_BUDGET // (2 * (tag_size + 1) * c_itemsize)
    lane_cap = min(8192, max(128, (max_bl_for_trans // 128) * 128))
    BL = _pick_lane_block(L, lane_cap)

    # Double-buffered feats + out + prev working set kept <= ~20 MiB: fits all
    # generations once vmem_limit_bytes is raised, with headroom on v7x's
    # 64 MiB physical VMEM.
    bytes_per_elem = 2 * (2 * f_itemsize + i_itemsize)
    row_cap = max(8, min(1024, _MAIN_STREAM_BUDGET // (bytes_per_elem * BL)))
    BB = _pick_row_block(B, row_cap, align=32)

    lane_steps = pl.cdiv(L, BL)
    # Feed v7x's two TensorCores only when the grid would otherwise be a
    # single step (on v5e/v6e extra steps are pure overhead).
    if lane_steps < 2 and BB == B and B >= 16 and (B // 2) % 8 == 0:
        BB = B // 2

    # Lane axis outer, batch axis inner: the trans block index (0, j) is then
    # constant across the inner loop, so it is fetched once per lane block
    # instead of once per grid step.
    grid = (lane_steps, pl.cdiv(B, BB))

    grid_spec = pltpu.PrefetchScalarGridSpec(
        num_scalar_prefetch=0,
        grid=grid,
        in_specs=[
            pl.BlockSpec((BB, BL), lambda j, i: (i, j)),              # prev (int8)
            pl.BlockSpec((BB, BL), lambda j, i: (i, j)),              # feats (flat)
            pl.BlockSpec((tag_size + 1, BL), lambda j, i: (0, j)),    # trans (resident)
        ],
        out_specs=pl.BlockSpec((BB, BL), lambda j, i: (i, j)),
    )

    out = pl.pallas_call(
        _crf_forward_kernel,
        out_shape=jax.ShapeDtypeStruct((B, L), feats.dtype),
        grid_spec=grid_spec,
        compiler_params=pltpu.CompilerParams(
            dimension_semantics=("parallel", "parallel"),
            vmem_limit_bytes=_VMEM_LIMIT_BYTES),
    )(prev_exp, feats2, trans_tiled)

    return out.reshape(B, S, T)


if __name__ == "__main__":
    tag_size = 4
    B, S = 2, 8

    key = jax.random.PRNGKey(0)
    k_trans, k_feats, k_tags = jax.random.split(key, 3)

    # Deterministic parameter init (nn.Parameter(torch.randn(tag_size+1, tag_size)))
    trans = jax.random.normal(k_trans, (tag_size + 1, tag_size), dtype=jnp.float32)
    feats = jax.random.normal(k_feats, (B, S, tag_size), dtype=jnp.float32)
    tags = jax.random.randint(k_tags, (B, S), 0, tag_size, dtype=jnp.int32)

    out = crf_forward(feats, tags, trans)
    out = jax.block_until_ready(out)

    # Pure-JAX reference of the same semantics.
    start = jnp.full((B, 1), tag_size, dtype=jnp.int32)
    prev_tags_ref = jnp.concatenate([start, tags], axis=1)[:, :-1]
    ref = feats + trans[prev_tags_ref]
    assert out.shape == (B, S, tag_size) and out.dtype == jnp.float32
    assert np.allclose(np.asarray(out), np.asarray(ref), atol=1e-6), "kernel mismatch"

    print("KERNEL_OK")
</pallas_src>

<mosaic_0001>
module attributes {stable_mosaic.version = 11 : i64} {
  func.func @_crf_forward_kernel(%arg0: i32, %arg1: i32, %arg2: memref<2x32xi8, #tpu.memory_space<vmem>>, %arg3: memref<2x32xf32, #tpu.memory_space<vmem>>, %arg4: memref<5x32xf32, #tpu.memory_space<vmem>>, %arg5: memref<2x32xf32, #tpu.memory_space<vmem>>) attributes {dimension_semantics = [#tpu.dimension_semantics<parallel>, #tpu.dimension_semantics<parallel>], iteration_bounds = array<i64: 1, 1>, scalar_prefetch = 0 : i64, scratch_operands = 0 : i64, tpu.core_type = #tpu.core_type<tc>, window_params = [{transform_indices = @transform_0, window_bounds = array<i64: 2, 32>}, {transform_indices = @transform_1, window_bounds = array<i64: 2, 32>}, {transform_indices = @transform_2, window_bounds = array<i64: 5, 32>}, {transform_indices = @transform_3, window_bounds = array<i64: 2, 32>}]} {
    %c0 = arith.constant 0 : index
    %c0_0 = arith.constant 0 : index
    %0 = vector.load %arg4[%c0, %c0_0] : memref<5x32xf32, #tpu.memory_space<vmem>>, vector<5x32xf32>
    %c0_1 = arith.constant 0 : index
    %c0_2 = arith.constant 0 : index
    %1 = vector.load %arg2[%c0_1, %c0_2] : memref<2x32xi8, #tpu.memory_space<vmem>>, vector<2x32xi8>
    %2 = arith.extsi %1 : vector<2x32xi8> to vector<2x32xi32>
    %c0_3 = arith.constant 0 : index
    %c0_4 = arith.constant 0 : index
    %3 = vector.load %arg3[%c0_3, %c0_4] : memref<2x32xf32, #tpu.memory_space<vmem>>, vector<2x32xf32>
    %4 = vector.extract_strided_slice %0 {offsets = [0, 0], sizes = [1, 32], strides = [1, 1]} : vector<5x32xf32> to vector<1x32xf32>
    %5 = vector.shape_cast %4 : vector<1x32xf32> to vector<1x32xf32>
    %6 = vector.broadcast %5 : vector<1x32xf32> to vector<2x32xf32>
    %c1_i32 = arith.constant 1 : i32
    %7 = vector.broadcast %c1_i32 : i32 to vector<2x32xi32>
    %8 = arith.cmpi eq, %2, %7 : vector<2x32xi32>
    %9 = vector.extract_strided_slice %0 {offsets = [1, 0], sizes = [1, 32], strides = [1, 1]} : vector<5x32xf32> to vector<1x32xf32>
    %10 = vector.shape_cast %9 : vector<1x32xf32> to vector<1x32xf32>
    %11 = vector.broadcast %10 : vector<1x32xf32> to vector<2x32xf32>
    %12 = arith.select %8, %11, %6 : vector<2x32xi1>, vector<2x32xf32>
    %c2_i32 = arith.constant 2 : i32
    %13 = vector.broadcast %c2_i32 : i32 to vector<2x32xi32>
    %14 = arith.cmpi eq, %2, %13 : vector<2x32xi32>
    %15 = vector.extract_strided_slice %0 {offsets = [2, 0], sizes = [1, 32], strides = [1, 1]} : vector<5x32xf32> to vector<1x32xf32>
    %16 = vector.shape_cast %15 : vector<1x32xf32> to vector<1x32xf32>
    %17 = vector.broadcast %16 : vector<1x32xf32> to vector<2x32xf32>
    %18 = arith.select %14, %17, %12 : vector<2x32xi1>, vector<2x32xf32>
    %c3_i32 = arith.constant 3 : i32
    %19 = vector.broadcast %c3_i32 : i32 to vector<2x32xi32>
    %20 = arith.cmpi eq, %2, %19 : vector<2x32xi32>
    %21 = vector.extract_strided_slice %0 {offsets = [3, 0], sizes = [1, 32], strides = [1, 1]} : vector<5x32xf32> to vector<1x32xf32>
    %22 = vector.shape_cast %21 : vector<1x32xf32> to vector<1x32xf32>
    %23 = vector.broadcast %22 : vector<1x32xf32> to vector<2x32xf32>
    %24 = arith.select %20, %23, %18 : vector<2x32xi1>, vector<2x32xf32>
    %c4_i32 = arith.constant 4 : i32
    %25 = vector.broadcast %c4_i32 : i32 to vector<2x32xi32>
    %26 = arith.cmpi eq, %2, %25 : vector<2x32xi32>
    %27 = vector.extract_strided_slice %0 {offsets = [4, 0], sizes = [1, 32], strides = [1, 1]} : vector<5x32xf32> to vector<1x32xf32>
    %28 = vector.shape_cast %27 : vector<1x32xf32> to vector<1x32xf32>
    %29 = vector.broadcast %28 : vector<1x32xf32> to vector<2x32xf32>
    %30 = arith.select %26, %29, %24 : vector<2x32xi1>, vector<2x32xf32>
    %31 = arith.addf %3, %30 : vector<2x32xf32>
    %c0_5 = arith.constant 0 : index
    %c0_6 = arith.constant 0 : index
    %32 = vector.load %arg5[%c0_5, %c0_6] : memref<2x32xf32, #tpu.memory_space<vmem>>, vector<2x32xf32>
    tpu.vector_store %arg5[%c0_5, %c0_6], %31 {strides = array<i32>} : memref<2x32xf32, #tpu.memory_space<vmem>>, vector<2x32xf32>,
    return
  }
  func.func @transform_0(%arg0: i32, %arg1: i32) -> (i32, i32) {
    %c0_i32 = arith.constant 0 : i32
    return %arg1, %arg0 : i32, i32
  }
  func.func @transform_1(%arg0: i32, %arg1: i32) -> (i32, i32) {
    %c0_i32 = arith.constant 0 : i32
    return %arg1, %arg0 : i32, i32
  }
  func.func @transform_2(%arg0: i32, %arg1: i32) -> (i32, i32) {
    %c0_i32 = arith.constant 0 : i32
    %c0_i32_0 = arith.constant 0 : i32
    return %c0_i32, %arg0 : i32, i32
  }
  func.func @transform_3(%arg0: i32, %arg1: i32) -> (i32, i32) {
    %c0_i32 = arith.constant 0 : i32
    return %arg1, %arg0 : i32, i32
  }
}

</mosaic_0001>

<llo_original>
// kernel: tile.9
$region0: #{tile.9}
  %s0 = inlined_call_operand.vmem [shape: f32[5,8,4], index: 0, kind: input, shape index: {}]
  %s1 = inlined_call_operand.vmem [shape: f32[5,32], index: 1, kind: output, shape index: {}]
  %v2 = vld [vmem:[%s0] ss:$8 sm:$0xf]
  %s3 = scalar_lea.vmem %s0, 28
  %v4 = vld [vmem:[%s3] sm:$0x10]
  %vm5 = vcmask 1044484
  %v6 = vsel %vm5, %v4, %v2
  %vm7 = vcmask 31744
  %8 = vst.msk [vmem:[%s1] sm:$0x1f] %vm7, %v6
  %s9 = scalar_lea.vmem %s0, 7
  %v10 = vld [vmem:[%s9] ss:$8 sm:$0xf]
  %s11 = scalar_lea.vmem %s0, 35
  %v12 = vld [vmem:[%s11] sm:$0x10]
  %vm13 = vcmask 1044484
  %v14 = vsel %vm13, %v12, %v10
  %15 = vrot.lane.b32.xlu0 %v14, 28
  %v16 = vpop.permute.xlu0 %15
  %vm17 = vcmask 261344
  %18 = vst.msk [vmem:[%s1] sm:$0x1f] %vm17, %v16
  %s19 = scalar_lea.vmem %s0, 6
  %v20 = vld [vmem:[%s19] ss:$8 sm:$0xf]
  %s21 = scalar_lea.vmem %s0, 34
  %v22 = vld [vmem:[%s21] sm:$0x10]
  %vm23 = vcmask 1044484
  %v24 = vsel %vm23, %v22, %v20
  %25 = vrot.lane.b32.xlu0 %v24, 24
  %v26 = vpop.permute.xlu0 %25
  %vm27 = vcmask 228544
  %28 = vst.msk [vmem:[%s1] sm:$0x1f] %vm27, %v26
  %s29 = scalar_lea.vmem %s0, 5
  %v30 = vld [vmem:[%s29] ss:$8 sm:$0xf]
  %s31 = scalar_lea.vmem %s0, 33
  %v32 = vld [vmem:[%s31] sm:$0x10]
  %vm33 = vcmask 1044484
  %v34 = vsel %vm33, %v32, %v30
  %35 = vrot.lane.b32.xlu0 %v34, 20
  %v36 = vpop.permute.xlu0 %35
  %vm37 = vcmask 195744
  %38 = vst.msk [vmem:[%s1] sm:$0x1f] %vm37, %v36
  %s39 = scalar_lea.vmem %s0, 4
  %v40 = vld [vmem:[%s39] ss:$8 sm:$0xf]
  %s41 = scalar_lea.vmem %s0, 32
  %v42 = vld [vmem:[%s41] sm:$0x10]
  %vm43 = vcmask 1044484
  %v44 = vsel %vm43, %v42, %v40
  %45 = vrot.lane.b32.xlu0 %v44, 16
  %v46 = vpop.permute.xlu0 %45
  %vm47 = vcmask 162944
  %48 = vst.msk [vmem:[%s1] sm:$0x1f] %vm47, %v46
  %s49 = scalar_lea.vmem %s0, 3
  %v50 = vld [vmem:[%s49] ss:$8 sm:$0xf]
  %s51 = scalar_lea.vmem %s0, 31
  %v52 = vld [vmem:[%s51] sm:$0x10]
  %vm53 = vcmask 1044484
  %v54 = vsel %vm53, %v52, %v50
  %55 = vrot.lane.b32.xlu0 %v54, 12
  %v56 = vpop.permute.xlu0 %55
  %vm57 = vcmask 130144
  %58 = vst.msk [vmem:[%s1] sm:$0x1f] %vm57, %v56
  %s59 = scalar_lea.vmem %s0, 2
  %v60 = vld [vmem:[%s59] ss:$8 sm:$0xf]
  %s61 = scalar_lea.vmem %s0, 30
  %v62 = vld [vmem:[%s61] sm:$0x10]
  %vm63 = vcmask 1044484
  %v64 = vsel %vm63, %v62, %v60
  %65 = vrot.lane.b32.xlu0 %v64, 8
  %v66 = vpop.permute.xlu0 %65
  %vm67 = vcmask 97344
  %68 = vst.msk [vmem:[%s1] sm:$0x1f] %vm67, %v66
  %s69 = scalar_lea.vmem %s0, 1
  %v70 = vld [vmem:[%s69] ss:$8 sm:$0xf]
  %s71 = scalar_lea.vmem %s0, 29
  %v72 = vld [vmem:[%s71] sm:$0x10]
  %vm73 = vcmask 1044484
  %v74 = vsel %vm73, %v72, %v70
  %75 = vrot.lane.b32.xlu0 %v74, 4
  %v76 = vpop.permute.xlu0 %75
  %vm77 = vcmask 64544
  %78 = vst.msk [vmem:[%s1] sm:$0x1f] %vm77, %v76

// kernel: crf_forward.1
$region0: #{crf_forward.1}
  #allocation0 [shape = 'u32[]', space=smem, size = 0x4, offset = 0x4, fixed_abs, tag = 'smem constant byte address 0x4 - core index']
  #allocation1 [shape = 'u32[72,128]{1,0:T(1,128)}', space=vmem, size = 0x9000, scoped, tag = 'internal scratch']
  %s0 = inlined_call_operand.vmem [shape: s8[2,32], index: 0, kind: input, shape index: {}]
  %s1 = inlined_call_operand.vmem [shape: f32[2,32], index: 1, kind: input, shape index: {}]
  %s2 = inlined_call_operand.vmem [shape: f32[5,32], index: 2, kind: input, shape index: {}]
  %s3 = inlined_call_operand.vmem [shape: f32[2,32], index: 3, kind: output, shape index: {}]
  %s4 = sld [smem:[#allocation0]]
  $region22: #{crf_forward.1} parent=0
    _
  %s6 = ssub.s32 1, %s4
  %s7 = scalar_select 0, %s6, %s4
  // Predicated region
  $region2: #{crf_forward.1} parent=0 // pred_check
    _
  $region3: #{crf_forward.1} parent=0 // pred_check_branch
    %9 = sbr.rel (0) target = $region5
  $region4: #{crf_forward.1} parent=0 // pred_region
    _
  $region5: #{crf_forward.1} parent=0 // pred_fallthru
    _
  // Predicated region
  $region6: #{crf_forward.1} parent=0 // pred_check
    _
  $region7: #{crf_forward.1} parent=0 // pred_check_branch
    %11 = sbr.rel (0) target = $region9
  $region8: #{crf_forward.1} parent=0 // pred_region
    _
  $region9: #{crf_forward.1} parent=0 // pred_fallthru
    _
  // Predicated region
  $region10: #{crf_forward.1} parent=0 // pred_check
    _
  $region11: #{crf_forward.1} parent=0 // pred_check_branch
    %13 = sbr.rel (0) target = $region13
  $region12: #{crf_forward.1} parent=0 // pred_region
    _
  $region13: #{crf_forward.1} parent=0 // pred_fallthru
    _
  %v14 = vld [vmem:[%s2] sm:$0x1f]
  %v15 = vld [vmem:[%s0] sm:$0x1]
  %v16 = vunpack.c.0.s8 %v15
  %v17 = vld [vmem:[%s1] sm:$0x3]
  %v18 = vperm.slane %v14, 0
  %vm19 = vcmp.eq.s32.totalorder %v16, 1
  %v20 = vperm.slane %v14, 1
  %v21 = vsel %vm19, %v20, %v18
  %vm22 = vcmp.eq.s32.totalorder %v16, 2
  %v23 = vperm.slane %v14, 2
  %v24 = vsel %vm22, %v23, %v21
  %vm25 = vcmp.eq.s32.totalorder %v16, 3
  %v26 = vperm.slane %v14, 3
  %v27 = vsel %vm25, %v26, %v24
  %vm28 = vcmp.eq.s32.totalorder %v16, 4
  %v29 = vperm.slane %v14, 4
  %v30 = vsel %vm28, %v29, %v27
  %v31 = vadd.f32 %v17, %v30
  %vm32 = vcmask 254976
  %33 = vst.msk [vmem:[%s3] sm:$0x3] %vm32, %v31
  // Predicated region
  $region14: #{crf_forward.1} parent=0 // pred_check
    _
  $region15: #{crf_forward.1} parent=0 // pred_check_branch
    %35 = sbr.rel (0) target = $region17
  $region16: #{crf_forward.1} parent=0 // pred_region
    _
  $region17: #{crf_forward.1} parent=0 // pred_fallthru
    _
  // Predicated region
  $region18: #{crf_forward.1} parent=0 // pred_check
    _
  $region19: #{crf_forward.1} parent=0 // pred_check_branch
    %37 = sbr.rel (0) target = $region21
  $region20: #{crf_forward.1} parent=0 // pred_region
    _
  $region21: #{crf_forward.1} parent=0 // pred_fallthru
    _

</llo_original>
